<compile_context>
chip_gen: v6e
topology: v6e:2x2x1
jax: 0.10.0
libtpu: 0.0.40
codegen_flags: <defaults>
</compile_context>

<pallas_src>
import math

import jax
import jax.numpy as jnp
from jax.experimental import pallas as pl
from jax.experimental.pallas import tpu as pltpu


def _twin_kernel(ws_ref, cls1_ref, cls2_ref, out_ref):
    # ws_ref: (2, tile_l) -- row 0 = w1, row 1 = w2 (resident across batch steps)
    # cls*_ref / out_ref: (tile_b, tile_l)
    acc_dtype = out_ref.dtype
    w1 = ws_ref[0:1, :]
    w2 = ws_ref[1:2, :]
    # Cast activations after load (free VPU work) -> no wrapper-side f32 copies.
    out_ref[...] = (w1 * cls1_ref[...].astype(acc_dtype)
                    + w2 * cls2_ref[...].astype(acc_dtype))


def _round_up(x, m):
    return ((x + m - 1) // m) * m


def _sublanes(dtype):
    # rows packed per vreg: 8 at 32-bit, 16 at 16-bit, 32 at 8-bit.
    return max(8, 32 // jnp.dtype(dtype).itemsize)


def twin_model_forward(w1, w2, cls1, cls2, *, target_tile_bytes=4 << 20,
                       vmem_limit_bytes=48 << 20):
    """logits = w1 * cls1 + w2 * cls2   (w1/w2 broadcast over the batch dim)."""
    B, L = cls1.shape
    assert cls2.shape == (B, L)
    assert w1.shape == (1, L) and w2.shape == (1, L)

    out_dtype = jnp.result_type(w1.dtype, w2.dtype, cls1.dtype, cls2.dtype)
    out_isz = jnp.dtype(out_dtype).itemsize
    c1_isz = jnp.dtype(cls1.dtype).itemsize
    c2_isz = jnp.dtype(cls2.dtype).itemsize
    sub = max(_sublanes(cls1.dtype), _sublanes(cls2.dtype), _sublanes(out_dtype))

    # ---- lane-dense layout: fold g batch rows into one 128-aligned row --------
    g = 1 if L % 128 == 0 else 128 // math.gcd(L, 128)
    Lp = L * g

    # Pad only up to a multiple of g (< g rows) when folding needs it; the ragged
    # last batch *block* is handled by Pallas masking, not by wrapper padding.
    B_pad = _round_up(B, g)
    if B_pad != B:
        pad = B_pad - B
        cls1 = jnp.pad(cls1, ((0, pad), (0, 0)))
        cls2 = jnp.pad(cls2, ((0, pad), (0, 0)))
    rows = B_pad // g
    cls1_f = cls1.reshape(rows, Lp)      # contiguous reshape, no data movement
    cls2_f = cls2.reshape(rows, Lp)

    # ---- lane tile: full row unless Lp is enormous -----------------------------
    if sub * Lp * out_isz <= target_tile_bytes:
        tile_l = Lp
    else:
        tile_l = max(128, (target_tile_bytes // (sub * out_isz)) // 128 * 128)
    n_l = pl.cdiv(Lp, tile_l)

    # ---- batch tile: ~target_tile_bytes per output tile ------------------------
    rows_budget = max(sub, (target_tile_bytes // (tile_l * out_isz)) // sub * sub)
    tile_b = min(rows_budget, rows)       # block == full dim is always legal
    n_b = pl.cdiv(rows, tile_b)

    # Round total step count to even so v7x's two TensorCores split work evenly.
    if (n_l * n_b) % 2 == 1:
        if n_b == 1:
            if rows > sub:
                tile_b = _round_up(pl.cdiv(rows, 2), sub)
                n_b = pl.cdiv(rows, tile_b)
        else:
            cand = _round_up(pl.cdiv(rows, n_b + 1), sub)
            if cand >= sub and (n_l * pl.cdiv(rows, cand)) % 2 == 0:
                tile_b = cand
                n_b = pl.cdiv(rows, cand)

    # ---- weights: one small resident (2, Lp) input (cast in wrapper; tiny) -----
    ws = jnp.concatenate([w1.astype(out_dtype), w2.astype(out_dtype)], axis=0)
    if g > 1:
        ws = jnp.tile(ws, (1, g))                         # (2, Lp)

    if n_l == 1:
        grid = (n_b,)
        in_specs = [
            pl.BlockSpec((2, Lp), lambda i: (0, 0)),           # ws (resident)
            pl.BlockSpec((tile_b, Lp), lambda i: (i, 0)),      # cls1
            pl.BlockSpec((tile_b, Lp), lambda i: (i, 0)),      # cls2
        ]
        out_specs = pl.BlockSpec((tile_b, Lp), lambda i: (i, 0))
        dims = ("parallel",)
    else:
        # Lane axis OUTER, batch INNER: ws block index constant across the inner
        # loop, so it is fetched once per lane tile instead of every step.
        grid = (n_l, n_b)
        in_specs = [
            pl.BlockSpec((2, tile_l), lambda j, i: (0, j)),
            pl.BlockSpec((tile_b, tile_l), lambda j, i: (i, j)),
            pl.BlockSpec((tile_b, tile_l), lambda j, i: (i, j)),
        ]
        out_specs = pl.BlockSpec((tile_b, tile_l), lambda j, i: (i, j))
        dims = ("parallel", "parallel")

    cost = pl.CostEstimate(
        flops=3 * rows * Lp,
        bytes_accessed=rows * Lp * (c1_isz + c2_isz + out_isz),
        transcendentals=0,
    )

    out_f = pl.pallas_call(
        _twin_kernel,
        out_shape=jax.ShapeDtypeStruct((rows, Lp), out_dtype),
        grid_spec=pltpu.PrefetchScalarGridSpec(
            num_scalar_prefetch=0,
            grid=grid,
            in_specs=in_specs,
            out_specs=out_specs,
        ),
        compiler_params=pltpu.CompilerParams(
            dimension_semantics=dims,
            vmem_limit_bytes=vmem_limit_bytes,
        ),
        cost_estimate=cost,
    )(ws, cls1_f, cls2_f)

    out = out_f.reshape(B_pad, L)
    if B_pad != B:
        out = out[:B]
    return out


if __name__ == "__main__":
    key = jax.random.PRNGKey(0)
    k_w1, k_w2, k_c1, k_c2 = jax.random.split(key, 4)

    def run_case(num_labels, batch, cls_dtype=jnp.float32, tol=1e-5):
        w1 = jax.random.normal(k_w1, (1, num_labels), dtype=jnp.float32)
        w2 = jax.random.normal(k_w2, (1, num_labels), dtype=jnp.float32)
        cls1 = jax.random.normal(k_c1, (batch, num_labels)).astype(cls_dtype)
        cls2 = jax.random.normal(k_c2, (batch, num_labels)).astype(cls_dtype)
        out = jax.block_until_ready(twin_model_forward(w1, w2, cls1, cls2))
        ref = w1 * cls1 + w2 * cls2
        assert out.shape == ref.shape and out.dtype == ref.dtype
        assert jnp.allclose(out, ref, atol=tol, rtol=tol), (num_labels, batch, cls_dtype)

    # small head (L=8) -> lane-folded (g=16), single full-dim block
    run_case(num_labels=8, batch=48)
    # 128-aligned labels -> direct path, even 2-step grid
    run_case(num_labels=128, batch=16)
    # ragged batch -> Pallas-masked last block (no wrapper padding)
    run_case(num_labels=256, batch=100)
    # mixed precision: bf16 activations cast in-kernel, f32 math/output
    run_case(num_labels=8, batch=40, cls_dtype=jnp.bfloat16)

    print("KERNEL_OK")
</pallas_src>

<mosaic_0001>
module attributes {stable_mosaic.version = 11 : i64} {
  func.func @_twin_kernel(%arg0: i32, %arg1: memref<2x128xf32, #tpu.memory_space<vmem>>, %arg2: memref<3x128xf32, #tpu.memory_space<vmem>>, %arg3: memref<3x128xf32, #tpu.memory_space<vmem>>, %arg4: memref<3x128xf32, #tpu.memory_space<vmem>>) attributes {dimension_semantics = [#tpu.dimension_semantics<parallel>], iteration_bounds = array<i64: 1>, scalar_prefetch = 0 : i64, scratch_operands = 0 : i64, tpu.core_type = #tpu.core_type<tc>, window_params = [{pipeline_mode = #tpu.pipeline_mode<synchronous>, transform_indices = @transform_0, window_bounds = array<i64: 2, 128>}, {transform_indices = @transform_1, window_bounds = array<i64: 3, 128>}, {transform_indices = @transform_2, window_bounds = array<i64: 3, 128>}, {transform_indices = @transform_3, window_bounds = array<i64: 3, 128>}]} {
    %c0 = arith.constant 0 : index
    %c0_0 = arith.constant 0 : index
    %0 = vector.load %arg1[%c0, %c0_0] : memref<2x128xf32, #tpu.memory_space<vmem>>, vector<1x128xf32>
    %c1 = arith.constant 1 : index
    %c0_1 = arith.constant 0 : index
    %1 = vector.load %arg1[%c1, %c0_1] : memref<2x128xf32, #tpu.memory_space<vmem>>, vector<1x128xf32>
    %c0_2 = arith.constant 0 : index
    %c0_3 = arith.constant 0 : index
    %2 = vector.load %arg2[%c0_2, %c0_3] : memref<3x128xf32, #tpu.memory_space<vmem>>, vector<3x128xf32>
    %3 = vector.broadcast %0 : vector<1x128xf32> to vector<3x128xf32>
    %4 = arith.mulf %3, %2 : vector<3x128xf32>
    %c0_4 = arith.constant 0 : index
    %c0_5 = arith.constant 0 : index
    %5 = vector.load %arg3[%c0_4, %c0_5] : memref<3x128xf32, #tpu.memory_space<vmem>>, vector<3x128xf32>
    %6 = vector.broadcast %1 : vector<1x128xf32> to vector<3x128xf32>
    %7 = arith.mulf %6, %5 : vector<3x128xf32>
    %8 = arith.addf %4, %7 : vector<3x128xf32>
    %c0_6 = arith.constant 0 : index
    %c0_7 = arith.constant 0 : index
    %9 = vector.load %arg4[%c0_6, %c0_7] : memref<3x128xf32, #tpu.memory_space<vmem>>, vector<3x128xf32>
    tpu.vector_store %arg4[%c0_6, %c0_7], %8 {strides = array<i32>} : memref<3x128xf32, #tpu.memory_space<vmem>>, vector<3x128xf32>,
    return
  }
  func.func @transform_0(%arg0: i32) -> (i32, i32) {
    %c0_i32 = arith.constant 0 : i32
    %c0_i32_0 = arith.constant 0 : i32
    %c0_i32_1 = arith.constant 0 : i32
    return %c0_i32, %c0_i32_0 : i32, i32
  }
  func.func @transform_1(%arg0: i32) -> (i32, i32) {
    %c0_i32 = arith.constant 0 : i32
    %c0_i32_0 = arith.constant 0 : i32
    return %arg0, %c0_i32 : i32, i32
  }
  func.func @transform_2(%arg0: i32) -> (i32, i32) {
    %c0_i32 = arith.constant 0 : i32
    %c0_i32_0 = arith.constant 0 : i32
    return %arg0, %c0_i32 : i32, i32
  }
  func.func @transform_3(%arg0: i32) -> (i32, i32) {
    %c0_i32 = arith.constant 0 : i32
    %c0_i32_0 = arith.constant 0 : i32
    return %arg0, %c0_i32 : i32, i32
  }
}

</mosaic_0001>

<llo_original>
// kernel: tpu_custom_call.1
$region0: #{tpu_custom_call.1}
  #allocation0 [shape = 'u32[]', space=smem, size = 0x4, offset = 0x4, fixed_abs, tag = 'smem constant byte address 0x4 - core index']
  #allocation1 [shape = 'u32[144,128]{1,0:T(1,128)}', space=vmem, size = 0x12000, scoped, tag = 'internal scratch']
  %s0 = inlined_call_operand.hbm [shape: f32[2,128], index: 0, kind: input, shape index: {}]
  %s1 = inlined_call_operand.hbm [shape: f32[3,128], index: 1, kind: input, shape index: {}]
  %s2 = inlined_call_operand.hbm [shape: f32[3,128], index: 2, kind: input, shape index: {}]
  %s3 = inlined_call_operand.hbm [shape: f32[3,128], index: 3, kind: output, shape index: {}]
  %s4 = sld [smem:[#allocation0]]
  $region34: #{tpu_custom_call.1} parent=0
    _
  %s6 = ssub.s32 1, %s4
  %s7 = scalar_select 0, %s6, %s4
  $region1: #{tpu_custom_call.1} parent=0
    #allocation2 [shape = 'u8[1024]{0}', space=vmem, size = 0x400, scoped, tag = 'input window, operand 0, single buffered']
    #allocation3 [shape = 's32[1]{0}', space=sflag, size = 0x4, scoped, tag = 'scoped memory for tpu_custom_call.1']
    #allocation4 [shape = 's32[1]{0}', space=sflag, size = 0x4, scoped, tag = 'scoped memory for tpu_custom_call.1']
    #allocation5 [shape = 'u8[2048]{0}', space=vmem, size = 0x800, scoped, tag = 'input window, operand 1, single buffered']
    #allocation6 [shape = 's32[1]{0}', space=sflag, size = 0x4, scoped, tag = 'scoped memory for tpu_custom_call.1']
    #allocation7 [shape = 'u8[2048]{0}', space=vmem, size = 0x800, scoped, tag = 'input window, operand 2, single buffered']
    #allocation8 [shape = 'u8[2048]{0}', space=vmem, size = 0x800, scoped, tag = 'output window, operand 0, single buffered']
    %8 = vsyncpa [#allocation3], 0
    %9 = vsyncpa [#allocation6], 0
    %10 = vsyncpa [#allocation4], 0
    // Predicated region
    $region2: #{tpu_custom_call.1} parent=1 // pred_check
      _
    $region3: #{tpu_custom_call.1} parent=1 // pred_check_branch
      %12 = sbr.rel (0) target = $region5
    $region4: #{tpu_custom_call.1} parent=1 // pred_region
      %s14 = ssub.s32 32, 32
      %15 = vsyncadd [#allocation3], %s14
      %s17 = sshll.u32 [#allocation2], 4
      %s18 = int_to_ptr.vmem [resolvable:$true] %s17
      %20 = dma.hbm_to_vmem [thread:$0]  %s0, 32, %s18, [#allocation3]
    $region5: #{tpu_custom_call.1} parent=1 // pred_fallthru
      _
    // Predicated region
    $region6: #{tpu_custom_call.1} parent=1 // pred_check
      _
    $region7: #{tpu_custom_call.1} parent=1 // pred_check_branch
      %22 = sbr.rel (0) target = $region9
    $region8: #{tpu_custom_call.1} parent=1 // pred_region
      %s24 = ssub.s32 64, 64
      %25 = vsyncadd [#allocation6], %s24
      %s27 = sshll.u32 [#allocation5], 4
      %s28 = int_to_ptr.vmem [resolvable:$true] %s27
      %30 = dma.hbm_to_vmem [thread:$0]  %s1, 64, %s28, [#allocation6]
    $region9: #{tpu_custom_call.1} parent=1 // pred_fallthru
      _
    // Predicated region
    $region10: #{tpu_custom_call.1} parent=1 // pred_check
      _
    $region11: #{tpu_custom_call.1} parent=1 // pred_check_branch
      %32 = sbr.rel (0) target = $region13
    $region12: #{tpu_custom_call.1} parent=1 // pred_region
      %s34 = ssub.s32 64, 64
      %35 = vsyncadd [#allocation6], %s34
      %s37 = sshll.u32 [#allocation7], 4
      %s38 = int_to_ptr.vmem [resolvable:$true] %s37
      %40 = dma.hbm_to_vmem [thread:$0]  %s2, 64, %s38, [#allocation6]
    $region13: #{tpu_custom_call.1} parent=1 // pred_fallthru
      _
    // Predicated region
    $region14: #{tpu_custom_call.1} parent=1 // pred_check
      _
    $region15: #{tpu_custom_call.1} parent=1 // pred_check_branch
      %42 = sbr.rel (0) target = $region17
    $region16: #{tpu_custom_call.1} parent=1 // pred_region
      %43 = dma.done [#allocation3], 32
    $region17: #{tpu_custom_call.1} parent=1 // pred_fallthru
      _
    // Predicated region
    $region18: #{tpu_custom_call.1} parent=1 // pred_check
      _
    $region19: #{tpu_custom_call.1} parent=1 // pred_check_branch
      %45 = sbr.rel (0) target = $region21
    $region20: #{tpu_custom_call.1} parent=1 // pred_region
      %46 = dma.done [#allocation6], 64
    $region21: #{tpu_custom_call.1} parent=1 // pred_fallthru
      _
    // Predicated region
    $region22: #{tpu_custom_call.1} parent=1 // pred_check
      _
    $region23: #{tpu_custom_call.1} parent=1 // pred_check_branch
      %48 = sbr.rel (0) target = $region25
    $region24: #{tpu_custom_call.1} parent=1 // pred_region
      %49 = dma.done [#allocation6], 64
    $region25: #{tpu_custom_call.1} parent=1 // pred_fallthru
      _
    %v50 = vld [vmem:[#allocation2] sm:$0x1]
    %v51 = vld [vmem:[#allocation2 + $0x1] sm:$0x1]
    %v52 = vld [vmem:[#allocation5] sm:$0x7]
    %v53 = vlaneseq
    %v54 = vshrl.u32 %v53, 7
    %v55 = vsub.s32 0, %v54
    %v56 = vrot.slane %v50, %v55
    %v57 = vmul.f32 %v56, %v52
    %v58 = vld [vmem:[#allocation7] sm:$0x7]
    %v59 = vlaneseq
    %v60 = vshrl.u32 %v59, 7
    %v61 = vsub.s32 0, %v60
    %v62 = vrot.slane %v51, %v61
    %v63 = vmul.f32 %v62, %v58
    %v64 = vadd.f32 %v57, %v63
    %65 = vst [vmem:[#allocation8] sm:$0x7] %v64
    // Predicated region
    $region26: #{tpu_custom_call.1} parent=1 // pred_check
      _
    $region27: #{tpu_custom_call.1} parent=1 // pred_check_branch
      %67 = sbr.rel (0) target = $region29
    $region28: #{tpu_custom_call.1} parent=1 // pred_region
      %s69 = ssub.s32 64, 64
      %70 = vsyncadd [#allocation4], %s69
      %s72 = sshll.u32 [#allocation8], 4
      %s73 = int_to_ptr.vmem [resolvable:$true] %s72
      %75 = dma.vmem_to_hbm [thread:$0]  %s73, 64, %s3, [#allocation4]
    $region29: #{tpu_custom_call.1} parent=1 // pred_fallthru
      _
    // Predicated region
    $region30: #{tpu_custom_call.1} parent=1 // pred_check
      _
    $region31: #{tpu_custom_call.1} parent=1 // pred_check_branch
      %77 = sbr.rel (0) target = $region33
    $region32: #{tpu_custom_call.1} parent=1 // pred_region
      %78 = dma.done [#allocation4], 64
    $region33: #{tpu_custom_call.1} parent=1 // pred_fallthru
      _
    %79 = vsyncpa [#allocation3], 1
    %80 = vsyncpa [#allocation6], 1
    %81 = vsyncpa [#allocation4], 1

</llo_original>
